<compile_context>
chip_gen: v6e
topology: v6e:2x2x1
jax: 0.10.0
libtpu: 0.0.40
codegen_flags: <defaults>
</compile_context>

<pallas_src>
import functools

import jax
import jax.numpy as jnp
import numpy as np
from jax.experimental import pallas as pl
from jax.experimental.pallas import tpu as pltpu

# murmur3-style finalizer constants as signed 32-bit Python ints.
_HASH_C1 = 0x9E3779B9 - (1 << 32)
_HASH_C2 = 0x85EBCA6B - (1 << 32)
_HASH_C3 = 0xC2B2AE35 - (1 << 32)


def _choose_token_tile(seq_len_padded, max_tile=256):
    """Largest multiple-of-8 divisor of seq_len_padded that is <= max_tile."""
    best = 8
    for t in range(8, min(seq_len_padded, max_tile) + 1, 8):
        if seq_len_padded % t == 0:
            best = t
    return best


def _bert_embedding_kernel(seq_sm, seed_sm, seg_ids_ref, tok_hbm, pos_ref,
                           seg_tab_ref, out_ref, gather_buf, sem, *,
                           tile, dropout_p, apply_dropout):
    """One grid step = one tile of `tile` consecutive tokens (flattened batch*seq)."""
    t = pl.program_id(0)
    n_tiles = pl.num_programs(0)
    slot = t % 2                      # double-buffer slot holding THIS tile's rows
    cur_off = slot * tile             # row offset of this tile inside gather_buf

    def issue_tile_gather(tile_idx, dst_slot):
        """Issue `tile` row-gather DMAs for tile `tile_idx` into buffer slot `dst_slot`."""
        base = tile_idx * tile
        dst_off = dst_slot * tile

        def body(j, carry):
            row = seq_sm[base + j]
            pltpu.make_async_copy(
                tok_hbm.at[pl.ds(row, 1), :],
                gather_buf.at[pl.ds(dst_off + j, 1), :],
                sem.at[dst_slot],
            ).start()
            return carry

        # Partial unroll -> descriptors issued back-to-back (scheduler visibility).
        jax.lax.fori_loop(0, tile, body, 0, unroll=8)

    # Prologue: the very first tile has to fetch its own rows.
    @pl.when(t == 0)
    def _():
        issue_tile_gather(t, slot)

    # Cross-step prefetch: fetch the NEXT tile's rows into the other slot so its
    # gather latency hides behind this step's compute + output writeback.
    @pl.when(t + 1 < n_tiles)
    def _():
        issue_tile_gather(t + 1, 1 - slot)

    # Position + segment embeddings (fused) -- computed while the gather DMAs for
    # this tile (issued one step earlier, or just above for t == 0) drain.
    ps = pos_ref[...].astype(jnp.float32)                               # (tile, D)
    seg_tab = seg_tab_ref[...].astype(jnp.float32)                      # (3, D)
    sid = seg_ids_ref[...]                                              # (tile, 1)
    ps = ps + jnp.where(sid == 0, seg_tab[0:1, :],
                        jnp.where(sid == 1, seg_tab[1:2, :], seg_tab[2:3, :]))

    # ONE aggregate wait for all `tile` row copies of this slot: the DMA
    # semaphore counts the total copied size, and the (tile, D) view here
    # matches the sum of the `tile` per-row (1, D) copies exactly.
    buf_view = gather_buf.at[pl.ds(cur_off, tile), :]
    pltpu.make_async_copy(buf_view, buf_view, sem.at[slot]).wait()

    x = gather_buf[pl.ds(cur_off, tile), :].astype(jnp.float32) + ps    # (tile, D)

    if apply_dropout:
        # TODO(synk): counter-based hash PRNG (murmur-style finalizer) -- same
        # statistics as nn.Dropout but not bit-exact vs torch's RNG stream.
        rows, cols = x.shape
        r = jax.lax.broadcasted_iota(jnp.int32, (rows, cols), 0)
        c = jax.lax.broadcasted_iota(jnp.int32, (rows, cols), 1)
        idx = (t * tile) * cols + r * cols + c          # global element index
        h = idx ^ (seed_sm[0] * jnp.int32(_HASH_C1))
        h = h * jnp.int32(_HASH_C2)
        h = h ^ (h >> 13)
        h = h * jnp.int32(_HASH_C3)
        h = h ^ (h >> 16)
        keep_prob = 1.0 - dropout_p
        threshold = jnp.int32(int(round(keep_prob * (1 << 23))))
        keep = (h & jnp.int32(0x7FFFFF)) < threshold    # integer-domain keep test
        x = jnp.where(keep, x * jnp.float32(1.0 / keep_prob), 0.0)

    out_ref[...] = x.astype(out_ref.dtype)


def bert_embedding_forward(sequence, segment_labels, tok_table, pos_table,
                           seg_table, *, dropout_p=0.1, training=False, seed=0,
                           max_tile=256):
    """Equivalent of BERTEmbedding.forward(sequence, segment_labels)."""
    B, S = sequence.shape
    V, D = tok_table.shape
    P = pos_table.shape[0]
    assert S <= P, "sequence longer than position table"

    # Pad the sequence axis to a multiple of 8 so every (tile, D)/(tile, 1)
    # block satisfies the TPU sublane constraint.
    S_pad = -(-S // 8) * 8
    if S_pad != S:
        pad = S_pad - S
        sequence = jnp.pad(sequence, ((0, 0), (0, pad)))
        segment_labels = jnp.pad(segment_labels, ((0, 0), (0, pad)))
    if P < S_pad:
        pos_table = jnp.pad(pos_table, ((0, S_pad - P), (0, 0)))
    pos_used = pos_table[:S_pad]

    tile = _choose_token_tile(S_pad, max_tile=max_tile)
    nts = S_pad // tile               # seq-tiles per sequence
    n_tiles = B * nts
    n_tok = B * S_pad

    # Flattened token ids live in SMEM via scalar prefetch.  (SMEM 1-D arrays
    # pad to next_pow2(4N) bytes -- chunk the batch for very large B*S.)
    seq_flat = sequence.reshape(n_tok).astype(jnp.int32)
    seg_col = segment_labels.reshape(n_tok, 1).astype(jnp.int32)
    seed_arr = jnp.asarray([seed], jnp.int32)

    apply_dropout = bool(training) and float(dropout_p) > 0.0

    kernel = functools.partial(
        _bert_embedding_kernel,
        tile=tile, dropout_p=float(dropout_p), apply_dropout=apply_dropout)

    grid_spec = pltpu.PrefetchScalarGridSpec(
        num_scalar_prefetch=2,                     # seq_flat, seed
        grid=(n_tiles,),
        in_specs=[
            # segment ids: one column, token index on the sublane axis
            pl.BlockSpec((tile, 1), lambda t, *_: (t, 0)),
            # token embedding table stays in HBM; gathered via manual row DMAs
            pl.BlockSpec(memory_space=pl.ANY),
            # positions: per-tile block (VMEM use independent of max_seq_len)
            pl.BlockSpec((tile, D), lambda t, *_: (t % nts, 0)),
            # segment table (3 rows): VMEM resident
            pl.BlockSpec((3, D), lambda t, *_: (0, 0)),
        ],
        out_specs=pl.BlockSpec((tile, D), lambda t, *_: (t, 0)),
        scratch_shapes=[
            # double-buffered gathered rows: slot s -> rows [s*tile, (s+1)*tile)
            pltpu.VMEM((2 * tile, D), tok_table.dtype),
            pltpu.SemaphoreType.DMA((2,)),         # one DMA semaphore per slot
        ],
    )

    out_flat = pl.pallas_call(
        kernel,
        out_shape=jax.ShapeDtypeStruct((n_tok, D), tok_table.dtype),
        grid_spec=grid_spec,
        # Cross-step prefetch carries DMA state between grid steps, so keep the
        # grid axis on one core ("arbitrary") to avoid dangling prefetch DMAs.
        compiler_params=pltpu.CompilerParams(
            dimension_semantics=("arbitrary",)),
    )(seq_flat, seed_arr, seg_col, tok_table, pos_used, seg_table)

    return out_flat.reshape(B, S_pad, D)[:, :S, :]


if __name__ == "__main__":
    # Small config consistent with BERTEmbedding(vocab_size, d_model, seq_len=64).
    vocab_size, d_model, max_seq_len = 32, 128, 64
    B, S = 2, 8

    key = jax.random.PRNGKey(0)
    k_tok, k_pos, k_seg, k_seq, k_lab = jax.random.split(key, 5)

    tok_table = 0.02 * jax.random.normal(k_tok, (vocab_size, d_model), jnp.float32)
    pos_table = 0.02 * jax.random.normal(k_pos, (max_seq_len, d_model), jnp.float32)
    seg_table = 0.02 * jax.random.normal(k_seg, (3, d_model), jnp.float32)

    sequence = jax.random.randint(k_seq, (B, S), 0, vocab_size, jnp.int32)
    segment_labels = jax.random.randint(k_lab, (B, S), 0, 3, jnp.int32)

    # Eval mode (dropout is identity) -> deterministic, compare to pure JAX.
    out = bert_embedding_forward(sequence, segment_labels, tok_table, pos_table,
                                 seg_table, dropout_p=0.1, training=False)
    out = jax.block_until_ready(out)

    ref = (tok_table[sequence]
           + pos_table[jnp.arange(S)][None, :, :]
           + seg_table[segment_labels])
    np.testing.assert_allclose(np.asarray(out), np.asarray(ref),
                               rtol=1e-6, atol=1e-6)
    assert out.shape == (B, S, d_model) and out.dtype == jnp.float32

    # Training mode: kept elements must equal ref / (1 - p); some must be kept.
    out_tr = bert_embedding_forward(sequence, segment_labels, tok_table, pos_table,
                                    seg_table, dropout_p=0.1, training=True,
                                    seed=123)
    out_tr = jax.block_until_ready(out_tr)
    out_tr_np = np.asarray(out_tr)
    ref_np = np.asarray(ref)
    kept = out_tr_np != 0.0
    assert kept.sum() > 0
    np.testing.assert_allclose(out_tr_np[kept], (ref_np / 0.9)[kept],
                               rtol=1e-5, atol=1e-6)

    print("KERNEL_OK")
</pallas_src>

<mosaic_0001>
module attributes {stable_mosaic.version = 11 : i64} {
  func.func @_bert_embedding_kernel(%arg0: i32, %arg1: memref<16xi32, #tpu.memory_space<smem>>, %arg2: memref<1xi32, #tpu.memory_space<smem>>, %arg3: memref<8x1xi32, #tpu.memory_space<vmem>>, %arg4: memref<32x128xf32, #tpu.memory_space<any>>, %arg5: memref<8x128xf32, #tpu.memory_space<vmem>>, %arg6: memref<3x128xf32, #tpu.memory_space<vmem>>, %arg7: memref<8x128xf32, #tpu.memory_space<vmem>>, %arg8: memref<16x128xf32, #tpu.memory_space<vmem>>, %arg9: memref<2x!tpu.dma_semaphore, #tpu.memory_space<semaphore_mem>>) attributes {dimension_semantics = [#tpu.dimension_semantics<arbitrary>], iteration_bounds = array<i64: 2>, scalar_prefetch = 2 : i64, scratch_operands = 2 : i64, tpu.core_type = #tpu.core_type<tc>, window_params = [{transform_indices = @transform_0, window_bounds = array<i64: 8, 1>}, {}, {transform_indices = @transform_2, window_bounds = array<i64: 8, 128>}, {pipeline_mode = #tpu.pipeline_mode<synchronous>, transform_indices = @transform_3, window_bounds = array<i64: 3, 128>}, {transform_indices = @transform_4, window_bounds = array<i64: 8, 128>}]} {
    %c2_i32 = arith.constant 2 : i32
    %c0_i32 = arith.constant 0 : i32
    %0 = arith.cmpi eq, %c2_i32, %c0_i32 : i32
    %c1_i32 = arith.constant 1 : i32
    %1 = arith.select %0, %c1_i32, %c2_i32 : i32
    %2 = arith.remsi %arg0, %1 : i32
    %c0_i32_0 = arith.constant 0 : i32
    %3 = arith.cmpi ne, %2, %c0_i32_0 : i32
    %c0_i32_1 = arith.constant 0 : i32
    %4 = arith.cmpi slt, %2, %c0_i32_1 : i32
    %c0_i32_2 = arith.constant 0 : i32
    %5 = arith.cmpi slt, %1, %c0_i32_2 : i32
    %6 = arith.xori %4, %5 : i1
    %7 = arith.andi %6, %3 : i1
    %8 = arith.addi %2, %1 : i32
    %9 = arith.select %7, %8, %2 : i32
    %c8_i32 = arith.constant 8 : i32
    %10 = arith.muli %9, %c8_i32 : i32
    %c0_i32_3 = arith.constant 0 : i32
    %11 = arith.cmpi eq, %arg0, %c0_i32_3 : i32
    %12 = arith.extui %11 : i1 to i32
    %c0_i32_4 = arith.constant 0 : i32
    %13 = arith.cmpi ne, %12, %c0_i32_4 : i32
    scf.if %13 {
      %c8_i32_20 = arith.constant 8 : i32
      %49 = arith.muli %arg0, %c8_i32_20 : i32
      %c8_i32_21 = arith.constant 8 : i32
      %50 = arith.muli %9, %c8_i32_21 : i32
      %c0_i32_22 = arith.constant 0 : i32
      %51 = arith.addi %49, %c0_i32_22 : i32
      %52 = arith.index_cast %51 : i32 to index
      %53 = memref.load %arg1[%52] : memref<16xi32, #tpu.memory_space<smem>>
      %54 = arith.addi %50, %c0_i32_22 : i32
      %c0_i32_23 = arith.constant 0 : i32
      %55 = tpu.memref_slice %arg4[%53, %c0_i32_23] : memref<32x128xf32, #tpu.memory_space<any>> -> memref<1x128xf32, #tpu.memory_space<any>>
      %c0_i32_24 = arith.constant 0 : i32
      %56 = tpu.memref_slice %arg8[%54, %c0_i32_24] : memref<16x128xf32, #tpu.memory_space<vmem>> -> memref<1x128xf32, #tpu.memory_space<vmem>>
      %57 = tpu.memref_slice %arg9[%9] : memref<2x!tpu.dma_semaphore, #tpu.memory_space<semaphore_mem>> -> memref<1x!tpu.dma_semaphore, #tpu.memory_space<semaphore_mem>>
      %58 = tpu.memref_squeeze %57 : memref<1x!tpu.dma_semaphore, #tpu.memory_space<semaphore_mem>> -> memref<!tpu.dma_semaphore, #tpu.memory_space<semaphore_mem>>
      tpu.enqueue_dma source(%55 : memref<1x128xf32, #tpu.memory_space<any>>) target(%56 : memref<1x128xf32, #tpu.memory_space<vmem>>) target_semaphore(%58 : memref<!tpu.dma_semaphore, #tpu.memory_space<semaphore_mem>>)
      %c1_i32_25 = arith.constant 1 : i32
      %59 = arith.addi %49, %c1_i32_25 : i32
      %60 = arith.index_cast %59 : i32 to index
      %61 = memref.load %arg1[%60] : memref<16xi32, #tpu.memory_space<smem>>
      %62 = arith.addi %50, %c1_i32_25 : i32
      %c0_i32_26 = arith.constant 0 : i32
      %63 = tpu.memref_slice %arg4[%61, %c0_i32_26] : memref<32x128xf32, #tpu.memory_space<any>> -> memref<1x128xf32, #tpu.memory_space<any>>
      %c0_i32_27 = arith.constant 0 : i32
      %64 = tpu.memref_slice %arg8[%62, %c0_i32_27] : memref<16x128xf32, #tpu.memory_space<vmem>> -> memref<1x128xf32, #tpu.memory_space<vmem>>
      %65 = tpu.memref_slice %arg9[%9] : memref<2x!tpu.dma_semaphore, #tpu.memory_space<semaphore_mem>> -> memref<1x!tpu.dma_semaphore, #tpu.memory_space<semaphore_mem>>
      %66 = tpu.memref_squeeze %65 : memref<1x!tpu.dma_semaphore, #tpu.memory_space<semaphore_mem>> -> memref<!tpu.dma_semaphore, #tpu.memory_space<semaphore_mem>>
      tpu.enqueue_dma source(%63 : memref<1x128xf32, #tpu.memory_space<any>>) target(%64 : memref<1x128xf32, #tpu.memory_space<vmem>>) target_semaphore(%66 : memref<!tpu.dma_semaphore, #tpu.memory_space<semaphore_mem>>)
      %c2_i32_28 = arith.constant 2 : i32
      %67 = arith.addi %49, %c2_i32_28 : i32
      %68 = arith.index_cast %67 : i32 to index
      %69 = memref.load %arg1[%68] : memref<16xi32, #tpu.memory_space<smem>>
      %70 = arith.addi %50, %c2_i32_28 : i32
      %c0_i32_29 = arith.constant 0 : i32
      %71 = tpu.memref_slice %arg4[%69, %c0_i32_29] : memref<32x128xf32, #tpu.memory_space<any>> -> memref<1x128xf32, #tpu.memory_space<any>>
      %c0_i32_30 = arith.constant 0 : i32
      %72 = tpu.memref_slice %arg8[%70, %c0_i32_30] : memref<16x128xf32, #tpu.memory_space<vmem>> -> memref<1x128xf32, #tpu.memory_space<vmem>>
      %73 = tpu.memref_slice %arg9[%9] : memref<2x!tpu.dma_semaphore, #tpu.memory_space<semaphore_mem>> -> memref<1x!tpu.dma_semaphore, #tpu.memory_space<semaphore_mem>>
      %74 = tpu.memref_squeeze %73 : memref<1x!tpu.dma_semaphore, #tpu.memory_space<semaphore_mem>> -> memref<!tpu.dma_semaphore, #tpu.memory_space<semaphore_mem>>
      tpu.enqueue_dma source(%71 : memref<1x128xf32, #tpu.memory_space<any>>) target(%72 : memref<1x128xf32, #tpu.memory_space<vmem>>) target_semaphore(%74 : memref<!tpu.dma_semaphore, #tpu.memory_space<semaphore_mem>>)
      %c3_i32 = arith.constant 3 : i32
      %75 = arith.addi %49, %c3_i32 : i32
      %76 = arith.index_cast %75 : i32 to index
      %77 = memref.load %arg1[%76] : memref<16xi32, #tpu.memory_space<smem>>
      %78 = arith.addi %50, %c3_i32 : i32
      %c0_i32_31 = arith.constant 0 : i32
      %79 = tpu.memref_slice %arg4[%77, %c0_i32_31] : memref<32x128xf32, #tpu.memory_space<any>> -> memref<1x128xf32, #tpu.memory_space<any>>
      %c0_i32_32 = arith.constant 0 : i32
      %80 = tpu.memref_slice %arg8[%78, %c0_i32_32] : memref<16x128xf32, #tpu.memory_space<vmem>> -> memref<1x128xf32, #tpu.memory_space<vmem>>
      %81 = tpu.memref_slice %arg9[%9] : memref<2x!tpu.dma_semaphore, #tpu.memory_space<semaphore_mem>> -> memref<1x!tpu.dma_semaphore, #tpu.memory_space<semaphore_mem>>
      %82 = tpu.memref_squeeze %81 : memref<1x!tpu.dma_semaphore, #tpu.memory_space<semaphore_mem>> -> memref<!tpu.dma_semaphore, #tpu.memory_space<semaphore_mem>>
      tpu.enqueue_dma source(%79 : memref<1x128xf32, #tpu.memory_space<any>>) target(%80 : memref<1x128xf32, #tpu.memory_space<vmem>>) target_semaphore(%82 : memref<!tpu.dma_semaphore, #tpu.memory_space<semaphore_mem>>)
      %c4_i32 = arith.constant 4 : i32
      %83 = arith.addi %49, %c4_i32 : i32
      %84 = arith.index_cast %83 : i32 to index
      %85 = memref.load %arg1[%84] : memref<16xi32, #tpu.memory_space<smem>>
      %86 = arith.addi %50, %c4_i32 : i32
      %c0_i32_33 = arith.constant 0 : i32
      %87 = tpu.memref_slice %arg4[%85, %c0_i32_33] : memref<32x128xf32, #tpu.memory_space<any>> -> memref<1x128xf32, #tpu.memory_space<any>>
      %c0_i32_34 = arith.constant 0 : i32
      %88 = tpu.memref_slice %arg8[%86, %c0_i32_34] : memref<16x128xf32, #tpu.memory_space<vmem>> -> memref<1x128xf32, #tpu.memory_space<vmem>>
      %89 = tpu.memref_slice %arg9[%9] : memref<2x!tpu.dma_semaphore, #tpu.memory_space<semaphore_mem>> -> memref<1x!tpu.dma_semaphore, #tpu.memory_space<semaphore_mem>>
      %90 = tpu.memref_squeeze %89 : memref<1x!tpu.dma_semaphore, #tpu.memory_space<semaphore_mem>> -> memref<!tpu.dma_semaphore, #tpu.memory_space<semaphore_mem>>
      tpu.enqueue_dma source(%87 : memref<1x128xf32, #tpu.memory_space<any>>) target(%88 : memref<1x128xf32, #tpu.memory_space<vmem>>) target_semaphore(%90 : memref<!tpu.dma_semaphore, #tpu.memory_space<semaphore_mem>>)
      %c5_i32 = arith.constant 5 : i32
      %91 = arith.addi %49, %c5_i32 : i32
      %92 = arith.index_cast %91 : i32 to index
      %93 = memref.load %arg1[%92] : memref<16xi32, #tpu.memory_space<smem>>
      %94 = arith.addi %50, %c5_i32 : i32
      %c0_i32_35 = arith.constant 0 : i32
      %95 = tpu.memref_slice %arg4[%93, %c0_i32_35] : memref<32x128xf32, #tpu.memory_space<any>> -> memref<1x128xf32, #tpu.memory_space<any>>
      %c0_i32_36 = arith.constant 0 : i32
      %96 = tpu.memref_slice %arg8[%94, %c0_i32_36] : memref<16x128xf32, #tpu.memory_space<vmem>> -> memref<1x128xf32, #tpu.memory_space<vmem>>
      %97 = tpu.memref_slice %arg9[%9] : memref<2x!tpu.dma_semaphore, #tpu.memory_space<semaphore_mem>> -> memref<1x!tpu.dma_semaphore, #tpu.memory_space<semaphore_mem>>
      %98 = tpu.memref_squeeze %97 : memref<1x!tpu.dma_semaphore, #tpu.memory_space<semaphore_mem>> -> memref<!tpu.dma_semaphore, #tpu.memory_space<semaphore_mem>>
      tpu.enqueue_dma source(%95 : memref<1x128xf32, #tpu.memory_space<any>>) target(%96 : memref<1x128xf32, #tpu.memory_space<vmem>>) target_semaphore(%98 : memref<!tpu.dma_semaphore, #tpu.memory_space<semaphore_mem>>)
      %c6_i32 = arith.constant 6 : i32
      %99 = arith.addi %49, %c6_i32 : i32
      %100 = arith.index_cast %99 : i32 to index
      %101 = memref.load %arg1[%100] : memref<16xi32, #tpu.memory_space<smem>>
      %102 = arith.addi %50, %c6_i32 : i32
      %c0_i32_37 = arith.constant 0 : i32
      %103 = tpu.memref_slice %arg4[%101, %c0_i32_37] : memref<32x128xf32, #tpu.memory_space<any>> -> memref<1x128xf32, #tpu.memory_space<any>>
      %c0_i32_38 = arith.constant 0 : i32
      %104 = tpu.memref_slice %arg8[%102, %c0_i32_38] : memref<16x128xf32, #tpu.memory_space<vmem>> -> memref<1x128xf32, #tpu.memory_space<vmem>>
      %105 = tpu.memref_slice %arg9[%9] : memref<2x!tpu.dma_semaphore, #tpu.memory_space<semaphore_mem>> -> memref<1x!tpu.dma_semaphore, #tpu.memory_space<semaphore_mem>>
      %106 = tpu.memref_squeeze %105 : memref<1x!tpu.dma_semaphore, #tpu.memory_space<semaphore_mem>> -> memref<!tpu.dma_semaphore, #tpu.memory_space<semaphore_mem>>
      tpu.enqueue_dma source(%103 : memref<1x128xf32, #tpu.memory_space<any>>) target(%104 : memref<1x128xf32, #tpu.memory_space<vmem>>) target_semaphore(%106 : memref<!tpu.dma_semaphore, #tpu.memory_space<semaphore_mem>>)
      %c7_i32 = arith.constant 7 : i32
      %107 = arith.addi %49, %c7_i32 : i32
      %108 = arith.index_cast %107 : i32 to index
      %109 = memref.load %arg1[%108] : memref<16xi32, #tpu.memory_space<smem>>
      %110 = arith.addi %50, %c7_i32 : i32
      %c0_i32_39 = arith.constant 0 : i32
      %111 = tpu.memref_slice %arg4[%109, %c0_i32_39] : memref<32x128xf32, #tpu.memory_space<any>> -> memref<1x128xf32, #tpu.memory_space<any>>
      %c0_i32_40 = arith.constant 0 : i32
      %112 = tpu.memref_slice %arg8[%110, %c0_i32_40] : memref<16x128xf32, #tpu.memory_space<vmem>> -> memref<1x128xf32, #tpu.memory_space<vmem>>
      %113 = tpu.memref_slice %arg9[%9] : memref<2x!tpu.dma_semaphore, #tpu.memory_space<semaphore_mem>> -> memref<1x!tpu.dma_semaphore, #tpu.memory_space<semaphore_mem>>
      %114 = tpu.memref_squeeze %113 : memref<1x!tpu.dma_semaphore, #tpu.memory_space<semaphore_mem>> -> memref<!tpu.dma_semaphore, #tpu.memory_space<semaphore_mem>>
      tpu.enqueue_dma source(%111 : memref<1x128xf32, #tpu.memory_space<any>>) target(%112 : memref<1x128xf32, #tpu.memory_space<vmem>>) target_semaphore(%114 : memref<!tpu.dma_semaphore, #tpu.memory_space<semaphore_mem>>)
      %c8_i32_41 = arith.constant 8 : i32
    } else {
    }
    %c1_i32_5 = arith.constant 1 : i32
    %14 = arith.addi %arg0, %c1_i32_5 : i32
    %c2_i32_6 = arith.constant 2 : i32
    %15 = arith.cmpi slt, %14, %c2_i32_6 : i32
    %16 = arith.extui %15 : i1 to i32
    %c0_i32_7 = arith.constant 0 : i32
    %17 = arith.cmpi ne, %16, %c0_i32_7 : i32
    scf.if %17 {
      %c1_i32_20 = arith.constant 1 : i32
      %49 = arith.addi %arg0, %c1_i32_20 : i32
      %c1_i32_21 = arith.constant 1 : i32
      %50 = arith.subi %c1_i32_21, %9 : i32
      %c8_i32_22 = arith.constant 8 : i32
      %51 = arith.muli %49, %c8_i32_22 : i32
      %c8_i32_23 = arith.constant 8 : i32
      %52 = arith.muli %50, %c8_i32_23 : i32
      %c0_i32_24 = arith.constant 0 : i32
      %53 = arith.addi %51, %c0_i32_24 : i32
      %54 = arith.index_cast %53 : i32 to index
      %55 = memref.load %arg1[%54] : memref<16xi32, #tpu.memory_space<smem>>
      %56 = arith.addi %52, %c0_i32_24 : i32
      %c0_i32_25 = arith.constant 0 : i32
      %57 = tpu.memref_slice %arg4[%55, %c0_i32_25] : memref<32x128xf32, #tpu.memory_space<any>> -> memref<1x128xf32, #tpu.memory_space<any>>
      %c0_i32_26 = arith.constant 0 : i32
      %58 = tpu.memref_slice %arg8[%56, %c0_i32_26] : memref<16x128xf32, #tpu.memory_space<vmem>> -> memref<1x128xf32, #tpu.memory_space<vmem>>
      %59 = tpu.memref_slice %arg9[%50] : memref<2x!tpu.dma_semaphore, #tpu.memory_space<semaphore_mem>> -> memref<1x!tpu.dma_semaphore, #tpu.memory_space<semaphore_mem>>
      %60 = tpu.memref_squeeze %59 : memref<1x!tpu.dma_semaphore, #tpu.memory_space<semaphore_mem>> -> memref<!tpu.dma_semaphore, #tpu.memory_space<semaphore_mem>>
      tpu.enqueue_dma source(%57 : memref<1x128xf32, #tpu.memory_space<any>>) target(%58 : memref<1x128xf32, #tpu.memory_space<vmem>>) target_semaphore(%60 : memref<!tpu.dma_semaphore, #tpu.memory_space<semaphore_mem>>)
      %c1_i32_27 = arith.constant 1 : i32
      %61 = arith.addi %51, %c1_i32_27 : i32
      %62 = arith.index_cast %61 : i32 to index
      %63 = memref.load %arg1[%62] : memref<16xi32, #tpu.memory_space<smem>>
      %64 = arith.addi %52, %c1_i32_27 : i32
      %c0_i32_28 = arith.constant 0 : i32
      %65 = tpu.memref_slice %arg4[%63, %c0_i32_28] : memref<32x128xf32, #tpu.memory_space<any>> -> memref<1x128xf32, #tpu.memory_space<any>>
      %c0_i32_29 = arith.constant 0 : i32
      %66 = tpu.memref_slice %arg8[%64, %c0_i32_29] : memref<16x128xf32, #tpu.memory_space<vmem>> -> memref<1x128xf32, #tpu.memory_space<vmem>>
      %67 = tpu.memref_slice %arg9[%50] : memref<2x!tpu.dma_semaphore, #tpu.memory_space<semaphore_mem>> -> memref<1x!tpu.dma_semaphore, #tpu.memory_space<semaphore_mem>>
      %68 = tpu.memref_squeeze %67 : memref<1x!tpu.dma_semaphore, #tpu.memory_space<semaphore_mem>> -> memref<!tpu.dma_semaphore, #tpu.memory_space<semaphore_mem>>
      tpu.enqueue_dma source(%65 : memref<1x128xf32, #tpu.memory_space<any>>) target(%66 : memref<1x128xf32, #tpu.memory_space<vmem>>) target_semaphore(%68 : memref<!tpu.dma_semaphore, #tpu.memory_space<semaphore_mem>>)
      %c2_i32_30 = arith.constant 2 : i32
      %69 = arith.addi %51, %c2_i32_30 : i32
      %70 = arith.index_cast %69 : i32 to index
      %71 = memref.load %arg1[%70] : memref<16xi32, #tpu.memory_space<smem>>
      %72 = arith.addi %52, %c2_i32_30 : i32
      %c0_i32_31 = arith.constant 0 : i32
      %73 = tpu.memref_slice %arg4[%71, %c0_i32_31] : memref<32x128xf32, #tpu.memory_space<any>> -> memref<1x128xf32, #tpu.memory_space<any>>
      %c0_i32_32 = arith.constant 0 : i32
      %74 = tpu.memref_slice %arg8[%72, %c0_i32_32] : memref<16x128xf32, #tpu.memory_space<vmem>> -> memref<1x128xf32, #tpu.memory_space<vmem>>
      %75 = tpu.memref_slice %arg9[%50] : memref<2x!tpu.dma_semaphore, #tpu.memory_space<semaphore_mem>> -> memref<1x!tpu.dma_semaphore, #tpu.memory_space<semaphore_mem>>
      %76 = tpu.memref_squeeze %75 : memref<1x!tpu.dma_semaphore, #tpu.memory_space<semaphore_mem>> -> memref<!tpu.dma_semaphore, #tpu.memory_space<semaphore_mem>>
      tpu.enqueue_dma source(%73 : memref<1x128xf32, #tpu.memory_space<any>>) target(%74 : memref<1x128xf32, #tpu.memory_space<vmem>>) target_semaphore(%76 : memref<!tpu.dma_semaphore, #tpu.memory_space<semaphore_mem>>)
      %c3_i32 = arith.constant 3 : i32
      %77 = arith.addi %51, %c3_i32 : i32
      %78 = arith.index_cast %77 : i32 to index
      %79 = memref.load %arg1[%78] : memref<16xi32, #tpu.memory_space<smem>>
      %80 = arith.addi %52, %c3_i32 : i32
      %c0_i32_33 = arith.constant 0 : i32
      %81 = tpu.memref_slice %arg4[%79, %c0_i32_33] : memref<32x128xf32, #tpu.memory_space<any>> -> memref<1x128xf32, #tpu.memory_space<any>>
      %c0_i32_34 = arith.constant 0 : i32
      %82 = tpu.memref_slice %arg8[%80, %c0_i32_34] : memref<16x128xf32, #tpu.memory_space<vmem>> -> memref<1x128xf32, #tpu.memory_space<vmem>>
      %83 = tpu.memref_slice %arg9[%50] : memref<2x!tpu.dma_semaphore, #tpu.memory_space<semaphore_mem>> -> memref<1x!tpu.dma_semaphore, #tpu.memory_space<semaphore_mem>>
      %84 = tpu.memref_squeeze %83 : memref<1x!tpu.dma_semaphore, #tpu.memory_space<semaphore_mem>> -> memref<!tpu.dma_semaphore, #tpu.memory_space<semaphore_mem>>
      tpu.enqueue_dma source(%81 : memref<1x128xf32, #tpu.memory_space<any>>) target(%82 : memref<1x128xf32, #tpu.memory_space<vmem>>) target_semaphore(%84 : memref<!tpu.dma_semaphore, #tpu.memory_space<semaphore_mem>>)
      %c4_i32 = arith.constant 4 : i32
      %85 = arith.addi %51, %c4_i32 : i32
      %86 = arith.index_cast %85 : i32 to index
      %87 = memref.load %arg1[%86] : memref<16xi32, #tpu.memory_space<smem>>
      %88 = arith.addi %52, %c4_i32 : i32
      %c0_i32_35 = arith.constant 0 : i32
      %89 = tpu.memref_slice %arg4[%87, %c0_i32_35] : memref<32x128xf32, #tpu.memory_space<any>> -> memref<1x128xf32, #tpu.memory_space<any>>
      %c0_i32_36 = arith.constant 0 : i32
      %90 = tpu.memref_slice %arg8[%88, %c0_i32_36] : memref<16x128xf32, #tpu.memory_space<vmem>> -> memref<1x128xf32, #tpu.memory_space<vmem>>
      %91 = tpu.memref_slice %arg9[%50] : memref<2x!tpu.dma_semaphore, #tpu.memory_space<semaphore_mem>> -> memref<1x!tpu.dma_semaphore, #tpu.memory_space<semaphore_mem>>
      %92 = tpu.memref_squeeze %91 : memref<1x!tpu.dma_semaphore, #tpu.memory_space<semaphore_mem>> -> memref<!tpu.dma_semaphore, #tpu.memory_space<semaphore_mem>>
      tpu.enqueue_dma source(%89 : memref<1x128xf32, #tpu.memory_space<any>>) target(%90 : memref<1x128xf32, #tpu.memory_space<vmem>>) target_semaphore(%92 : memref<!tpu.dma_semaphore, #tpu.memory_space<semaphore_mem>>)
      %c5_i32 = arith.constant 5 : i32
      %93 = arith.addi %51, %c5_i32 : i32
      %94 = arith.index_cast %93 : i32 to index
      %95 = memref.load %arg1[%94] : memref<16xi32, #tpu.memory_space<smem>>
      %96 = arith.addi %52, %c5_i32 : i32
      %c0_i32_37 = arith.constant 0 : i32
      %97 = tpu.memref_slice %arg4[%95, %c0_i32_37] : memref<32x128xf32, #tpu.memory_space<any>> -> memref<1x128xf32, #tpu.memory_space<any>>
      %c0_i32_38 = arith.constant 0 : i32
      %98 = tpu.memref_slice %arg8[%96, %c0_i32_38] : memref<16x128xf32, #tpu.memory_space<vmem>> -> memref<1x128xf32, #tpu.memory_space<vmem>>
      %99 = tpu.memref_slice %arg9[%50] : memref<2x!tpu.dma_semaphore, #tpu.memory_space<semaphore_mem>> -> memref<1x!tpu.dma_semaphore, #tpu.memory_space<semaphore_mem>>
      %100 = tpu.memref_squeeze %99 : memref<1x!tpu.dma_semaphore, #tpu.memory_space<semaphore_mem>> -> memref<!tpu.dma_semaphore, #tpu.memory_space<semaphore_mem>>
      tpu.enqueue_dma source(%97 : memref<1x128xf32, #tpu.memory_space<any>>) target(%98 : memref<1x128xf32, #tpu.memory_space<vmem>>) target_semaphore(%100 : memref<!tpu.dma_semaphore, #tpu.memory_space<semaphore_mem>>)
      %c6_i32 = arith.constant 6 : i32
      %101 = arith.addi %51, %c6_i32 : i32
      %102 = arith.index_cast %101 : i32 to index
      %103 = memref.load %arg1[%102] : memref<16xi32, #tpu.memory_space<smem>>
      %104 = arith.addi %52, %c6_i32 : i32
      %c0_i32_39 = arith.constant 0 : i32
      %105 = tpu.memref_slice %arg4[%103, %c0_i32_39] : memref<32x128xf32, #tpu.memory_space<any>> -> memref<1x128xf32, #tpu.memory_space<any>>
      %c0_i32_40 = arith.constant 0 : i32
      %106 = tpu.memref_slice %arg8[%104, %c0_i32_40] : memref<16x128xf32, #tpu.memory_space<vmem>> -> memref<1x128xf32, #tpu.memory_space<vmem>>
      %107 = tpu.memref_slice %arg9[%50] : memref<2x!tpu.dma_semaphore, #tpu.memory_space<semaphore_mem>> -> memref<1x!tpu.dma_semaphore, #tpu.memory_space<semaphore_mem>>
      %108 = tpu.memref_squeeze %107 : memref<1x!tpu.dma_semaphore, #tpu.memory_space<semaphore_mem>> -> memref<!tpu.dma_semaphore, #tpu.memory_space<semaphore_mem>>
      tpu.enqueue_dma source(%105 : memref<1x128xf32, #tpu.memory_space<any>>) target(%106 : memref<1x128xf32, #tpu.memory_space<vmem>>) target_semaphore(%108 : memref<!tpu.dma_semaphore, #tpu.memory_space<semaphore_mem>>)
      %c7_i32 = arith.constant 7 : i32
      %109 = arith.addi %51, %c7_i32 : i32
      %110 = arith.index_cast %109 : i32 to index
      %111 = memref.load %arg1[%110] : memref<16xi32, #tpu.memory_space<smem>>
      %112 = arith.addi %52, %c7_i32 : i32
      %c0_i32_41 = arith.constant 0 : i32
      %113 = tpu.memref_slice %arg4[%111, %c0_i32_41] : memref<32x128xf32, #tpu.memory_space<any>> -> memref<1x128xf32, #tpu.memory_space<any>>
      %c0_i32_42 = arith.constant 0 : i32
      %114 = tpu.memref_slice %arg8[%112, %c0_i32_42] : memref<16x128xf32, #tpu.memory_space<vmem>> -> memref<1x128xf32, #tpu.memory_space<vmem>>
      %115 = tpu.memref_slice %arg9[%50] : memref<2x!tpu.dma_semaphore, #tpu.memory_space<semaphore_mem>> -> memref<1x!tpu.dma_semaphore, #tpu.memory_space<semaphore_mem>>
      %116 = tpu.memref_squeeze %115 : memref<1x!tpu.dma_semaphore, #tpu.memory_space<semaphore_mem>> -> memref<!tpu.dma_semaphore, #tpu.memory_space<semaphore_mem>>
      tpu.enqueue_dma source(%113 : memref<1x128xf32, #tpu.memory_space<any>>) target(%114 : memref<1x128xf32, #tpu.memory_space<vmem>>) target_semaphore(%116 : memref<!tpu.dma_semaphore, #tpu.memory_space<semaphore_mem>>)
      %c8_i32_43 = arith.constant 8 : i32
    } else {
    }
    %c0 = arith.constant 0 : index
    %c0_8 = arith.constant 0 : index
    %18 = vector.load %arg5[%c0, %c0_8] : memref<8x128xf32, #tpu.memory_space<vmem>>, vector<8x128xf32>
    %c0_9 = arith.constant 0 : index
    %c0_10 = arith.constant 0 : index
    %19 = vector.load %arg6[%c0_9, %c0_10] : memref<3x128xf32, #tpu.memory_space<vmem>>, vector<3x128xf32>
    %c0_11 = arith.constant 0 : index
    %c0_12 = arith.constant 0 : index
    %20 = vector.load %arg3[%c0_11, %c0_12] : memref<8x1xi32, #tpu.memory_space<vmem>>, vector<8x1xi32>
    %c0_i32_13 = arith.constant 0 : i32
    %21 = vector.broadcast %c0_i32_13 : i32 to vector<8x1xi32>
    %22 = arith.cmpi eq, %20, %21 : vector<8x1xi32>
    %23 = vector.extract_strided_slice %19 {offsets = [0, 0], sizes = [1, 128], strides = [1, 1]} : vector<3x128xf32> to vector<1x128xf32>
    %c1_i32_14 = arith.constant 1 : i32
    %24 = vector.broadcast %c1_i32_14 : i32 to vector<8x1xi32>
    %25 = arith.cmpi eq, %20, %24 : vector<8x1xi32>
    %26 = vector.extract_strided_slice %19 {offsets = [1, 0], sizes = [1, 128], strides = [1, 1]} : vector<3x128xf32> to vector<1x128xf32>
    %27 = vector.extract_strided_slice %19 {offsets = [2, 0], sizes = [1, 128], strides = [1, 1]} : vector<3x128xf32> to vector<1x128xf32>
    %28 = vector.shape_cast %25 : vector<8x1xi1> to vector<8x1xi1>
    %29 = vector.broadcast %28 : vector<8x1xi1> to vector<8x128xi1>
    %30 = vector.shape_cast %26 : vector<1x128xf32> to vector<1x128xf32>
    %31 = vector.broadcast %30 : vector<1x128xf32> to vector<8x128xf32>
    %32 = vector.shape_cast %27 : vector<1x128xf32> to vector<1x128xf32>
    %33 = vector.broadcast %32 : vector<1x128xf32> to vector<8x128xf32>
    %34 = arith.select %29, %31, %33 : vector<8x128xi1>, vector<8x128xf32>
    %35 = vector.shape_cast %22 : vector<8x1xi1> to vector<8x1xi1>
    %36 = vector.broadcast %35 : vector<8x1xi1> to vector<8x128xi1>
    %37 = vector.shape_cast %23 : vector<1x128xf32> to vector<1x128xf32>
    %38 = vector.broadcast %37 : vector<1x128xf32> to vector<8x128xf32>
    %39 = arith.select %36, %38, %34 : vector<8x128xi1>, vector<8x128xf32>
    %40 = arith.addf %18, %39 : vector<8x128xf32>
    %c0_i32_15 = arith.constant 0 : i32
    %41 = tpu.memref_slice %arg8[%10, %c0_i32_15] : memref<16x128xf32, #tpu.memory_space<vmem>> -> memref<8x128xf32, #tpu.memory_space<vmem>>
    %c0_i32_16 = arith.constant 0 : i32
    %42 = tpu.memref_slice %arg8[%10, %c0_i32_16] : memref<16x128xf32, #tpu.memory_space<vmem>> -> memref<8x128xf32, #tpu.memory_space<vmem>>
    %43 = tpu.memref_slice %arg9[%9] : memref<2x!tpu.dma_semaphore, #tpu.memory_space<semaphore_mem>> -> memref<1x!tpu.dma_semaphore, #tpu.memory_space<semaphore_mem>>
    %44 = tpu.memref_squeeze %43 : memref<1x!tpu.dma_semaphore, #tpu.memory_space<semaphore_mem>> -> memref<!tpu.dma_semaphore, #tpu.memory_space<semaphore_mem>>
    tpu.wait_dma2 semaphore(%44 : memref<!tpu.dma_semaphore, #tpu.memory_space<semaphore_mem>>) src(%41 : memref<8x128xf32, #tpu.memory_space<vmem>>) dst(%42 : memref<8x128xf32, #tpu.memory_space<vmem>>)
    %45 = arith.index_cast %10 : i32 to index
    %c0_17 = arith.constant 0 : index
    %46 = vector.load %arg8[%45, %c0_17] : memref<16x128xf32, #tpu.memory_space<vmem>>, vector<8x128xf32>
    %47 = arith.addf %46, %40 : vector<8x128xf32>
    %c0_18 = arith.constant 0 : index
    %c0_19 = arith.constant 0 : index
    %48 = vector.load %arg7[%c0_18, %c0_19] : memref<8x128xf32, #tpu.memory_space<vmem>>, vector<8x128xf32>
    tpu.vector_store %arg7[%c0_18, %c0_19], %47 {strides = array<i32>} : memref<8x128xf32, #tpu.memory_space<vmem>>, vector<8x128xf32>,
    return
  }
  func.func @transform_0(%arg0: i32, %arg1: memref<16xi32, #tpu.memory_space<smem>>, %arg2: memref<1xi32, #tpu.memory_space<smem>>) -> (i32, i32) {
    %c0_i32 = arith.constant 0 : i32
    %c0_i32_0 = arith.constant 0 : i32
    return %arg0, %c0_i32 : i32, i32
  }
  func.func @transform_2(%arg0: i32, %arg1: memref<16xi32, #tpu.memory_space<smem>>, %arg2: memref<1xi32, #tpu.memory_space<smem>>) -> (i32, i32) {
    %c1_i32 = arith.constant 1 : i32
    %c0_i32 = arith.constant 0 : i32
    %0 = arith.cmpi eq, %c1_i32, %c0_i32 : i32
    %c1_i32_0 = arith.constant 1 : i32
    %1 = arith.select %0, %c1_i32_0, %c1_i32 : i32
    %2 = arith.remsi %arg0, %1 : i32
    %c0_i32_1 = arith.constant 0 : i32
    %3 = arith.cmpi ne, %2, %c0_i32_1 : i32
    %c0_i32_2 = arith.constant 0 : i32
    %4 = arith.cmpi slt, %2, %c0_i32_2 : i32
    %c0_i32_3 = arith.constant 0 : i32
    %5 = arith.cmpi slt, %1, %c0_i32_3 : i32
    %6 = arith.xori %4, %5 : i1
    %7 = arith.andi %6, %3 : i1
    %8 = arith.addi %2, %1 : i32
    %9 = arith.select %7, %8, %2 : i32
    %c0_i32_4 = arith.constant 0 : i32
    %c0_i32_5 = arith.constant 0 : i32
    return %9, %c0_i32_4 : i32, i32
  }
  func.func @transform_3(%arg0: i32, %arg1: memref<16xi32, #tpu.memory_space<smem>>, %arg2: memref<1xi32, #tpu.memory_space<smem>>) -> (i32, i32) {
    %c0_i32 = arith.constant 0 : i32
    %c0_i32_0 = arith.constant 0 : i32
    %c0_i32_1 = arith.constant 0 : i32
    return %c0_i32, %c0_i32_0 : i32, i32
  }
  func.func @transform_4(%arg0: i32, %arg1: memref<16xi32, #tpu.memory_space<smem>>, %arg2: memref<1xi32, #tpu.memory_space<smem>>) -> (i32, i32) {
    %c0_i32 = arith.constant 0 : i32
    %c0_i32_0 = arith.constant 0 : i32
    return %arg0, %c0_i32 : i32, i32
  }
}

</mosaic_0001>

<llo_original>
// kernel: tpu_custom_call.1
$region0: #{tpu_custom_call.1}
  #allocation0 [shape = 'u32[]', space=smem, size = 0x4, offset = 0x4, fixed_abs, tag = 'smem constant byte address 0x4 - core index']
  #allocation1 [shape = 'u32[144,128]{1,0:T(1,128)}', space=vmem, size = 0x12000, scoped, tag = 'internal scratch']
  #allocation2 [shape = 'f32[16,128]{1,0:T(8,128)}', space=vmem, size = 0x2000, scoped, tag = 'scratch operand']
  #allocation3 [shape = 's32[2]{0}', space=sflag, size = 0x8, scoped, tag = 'scratch operand']
  #allocation4 [shape = 's32[1]{0}', space=sflag, size = 0x4, scoped, tag = 'scoped memory for tpu_custom_call.1']
  #allocation5 [shape = 'u8[512]{0}', space=smem, size = 0x200, scoped, tag = 'prefetched SMEM operand 0']
  #allocation6 [shape = 's32[1]{0:T(128)S(6)}', space=smem, size = 0x200, scoped, tag = 'prefetched SMEM operand 1']
  #allocation9 [shape = 's32[]', space=sflag, size = 0x4, offset = 0, fixed_abs, tag = 'sflag constant byte address 0x0 - dummy sync flag']
  #allocation10 [shape = 's32[]', space=sflag, size = 0x4, offset = 0, fixed_abs, tag = 'sflag constant byte address 0x0 - dummy sync flag']
  #allocation11 [shape = 'u32[]', space=smem, size = 0x4, offset = 0x44, fixed_abs, tag = 'smem constant byte address 0x44 - assertion arg 0']
  #allocation12 [shape = 'u32[]', space=smem, size = 0x4, offset = 0x48, fixed_abs, tag = 'smem constant byte address 0x48 - assertion arg 1']
  #allocation13 [shape = 's32[]', space=sflag, size = 0x4, offset = 0, fixed_abs, tag = 'sflag constant byte address 0x0 - dummy sync flag']
  #allocation14 [shape = 's32[]', space=sflag, size = 0x4, offset = 0, fixed_abs, tag = 'sflag constant byte address 0x0 - dummy sync flag']
  #allocation15 [shape = 's32[]', space=sflag, size = 0x4, offset = 0, fixed_abs, tag = 'sflag constant byte address 0x0 - dummy sync flag']
  #allocation16 [shape = 's32[]', space=sflag, size = 0x4, offset = 0, fixed_abs, tag = 'sflag constant byte address 0x0 - dummy sync flag']
  #allocation17 [shape = 's32[]', space=sflag, size = 0x4, offset = 0, fixed_abs, tag = 'sflag constant byte address 0x0 - dummy sync flag']
  #allocation18 [shape = 's32[]', space=sflag, size = 0x4, offset = 0, fixed_abs, tag = 'sflag constant byte address 0x0 - dummy sync flag']
  #allocation19 [shape = 's32[]', space=sflag, size = 0x4, offset = 0, fixed_abs, tag = 'sflag constant byte address 0x0 - dummy sync flag']
  #allocation20 [shape = 's32[]', space=sflag, size = 0x4, offset = 0, fixed_abs, tag = 'sflag constant byte address 0x0 - dummy sync flag']
  #allocation21 [shape = 's32[]', space=sflag, size = 0x4, offset = 0, fixed_abs, tag = 'sflag constant byte address 0x0 - dummy sync flag']
  #allocation22 [shape = 's32[]', space=sflag, size = 0x4, offset = 0, fixed_abs, tag = 'sflag constant byte address 0x0 - dummy sync flag']
  #allocation23 [shape = 's32[]', space=sflag, size = 0x4, offset = 0, fixed_abs, tag = 'sflag constant byte address 0x0 - dummy sync flag']
  #allocation24 [shape = 's32[]', space=sflag, size = 0x4, offset = 0, fixed_abs, tag = 'sflag constant byte address 0x0 - dummy sync flag']
  #allocation25 [shape = 's32[]', space=sflag, size = 0x4, offset = 0, fixed_abs, tag = 'sflag constant byte address 0x0 - dummy sync flag']
  #allocation26 [shape = 's32[]', space=sflag, size = 0x4, offset = 0, fixed_abs, tag = 'sflag constant byte address 0x0 - dummy sync flag']
  #allocation27 [shape = 's32[]', space=sflag, size = 0x4, offset = 0, fixed_abs, tag = 'sflag constant byte address 0x0 - dummy sync flag']
  #allocation28 [shape = 's32[]', space=sflag, size = 0x4, offset = 0, fixed_abs, tag = 'sflag constant byte address 0x0 - dummy sync flag']
  #allocation29 [shape = 's32[]', space=sflag, size = 0x4, offset = 0, fixed_abs, tag = 'sflag constant byte address 0x0 - dummy sync flag']
  #allocation30 [shape = 's32[]', space=sflag, size = 0x4, offset = 0, fixed_abs, tag = 'sflag constant byte address 0x0 - dummy sync flag']
  #allocation31 [shape = 's32[]', space=sflag, size = 0x4, offset = 0, fixed_abs, tag = 'sflag constant byte address 0x0 - dummy sync flag']
  #allocation32 [shape = 's32[]', space=sflag, size = 0x4, offset = 0, fixed_abs, tag = 'sflag constant byte address 0x0 - dummy sync flag']
  #allocation33 [shape = 's32[]', space=sflag, size = 0x4, offset = 0, fixed_abs, tag = 'sflag constant byte address 0x0 - dummy sync flag']
  #allocation34 [shape = 's32[]', space=sflag, size = 0x4, offset = 0, fixed_abs, tag = 'sflag constant byte address 0x0 - dummy sync flag']
  #allocation35 [shape = 's32[]', space=sflag, size = 0x4, offset = 0, fixed_abs, tag = 'sflag constant byte address 0x0 - dummy sync flag']
  #allocation36 [shape = 's32[]', space=sflag, size = 0x4, offset = 0, fixed_abs, tag = 'sflag constant byte address 0x0 - dummy sync flag']
  #allocation37 [shape = 's32[]', space=sflag, size = 0x4, offset = 0, fixed_abs, tag = 'sflag constant byte address 0x0 - dummy sync flag']
  #allocation38 [shape = 's32[]', space=sflag, size = 0x4, offset = 0, fixed_abs, tag = 'sflag constant byte address 0x0 - dummy sync flag']
  #allocation39 [shape = 's32[]', space=sflag, size = 0x4, offset = 0, fixed_abs, tag = 'sflag constant byte address 0x0 - dummy sync flag']
  #allocation40 [shape = 's32[]', space=sflag, size = 0x4, offset = 0, fixed_abs, tag = 'sflag constant byte address 0x0 - dummy sync flag']
  #allocation41 [shape = 's32[]', space=sflag, size = 0x4, offset = 0, fixed_abs, tag = 'sflag constant byte address 0x0 - dummy sync flag']
  #allocation42 [shape = 's32[]', space=sflag, size = 0x4, offset = 0, fixed_abs, tag = 'sflag constant byte address 0x0 - dummy sync flag']
  %s0 = inlined_call_operand.vmem [shape: s32[16], index: 0, kind: input, shape index: {}]
  %s1 = inlined_call_operand.<no memory space> [shape: s32[1], index: 1, kind: input, shape index: {}]
  %s2 = inlined_call_operand.vmem [shape: s32[16,1], index: 2, kind: input, shape index: {}]
  %s3 = inlined_call_operand.hbm [shape: f32[32,128], index: 3, kind: input, shape index: {}]
  %s4 = inlined_call_operand.vmem [shape: f32[8,128], index: 4, kind: input, shape index: {}]
  %s5 = inlined_call_operand.vmem [shape: f32[3,128], index: 5, kind: input, shape index: {}]
  %s6 = inlined_call_operand.hbm [shape: f32[16,128], index: 6, kind: output, shape index: {}]
  %s7 = sld [smem:[#allocation0]]
  $region117: #{tpu_custom_call.1} parent=0
    _
  %s9 = ssub.s32 1, %s7
  %s10 = scalar_select 0, %s9, %s7
  %s11 = sshll.u32 %s0, 4
  %s12 = int_to_ptr.vmem [resolvable:$true] %s11
  %14 = dma.vmem_to_smem %s12, 16, [#allocation5], [#allocation4]
  %15 = sst [smem:[#allocation6]] %s1
  %16 = dma.done [#allocation4], 16
  %17 = sfence
  $region1: #{tpu_custom_call.1} parent=0
    #allocation7 [shape = 'u8[8192]{0}', space=vmem, size = 0x2000, scoped, tag = 'output window, operand 0']
    #allocation8 [shape = 's32[2]{0}', space=sflag, size = 0x8, scoped, tag = 'scoped memory for tpu_custom_call.1']
    %18 = vsyncpa [#allocation8], 0
    %s19 = scalar_lea.sflag [#allocation8], 1
    %20 = vsyncpa %s19, 0
    loop: start=0, step=1, limit=4
    $region2: #{tpu_custom_call.1} parent=1 // loop_pre_header
      _
    $region3: #{tpu_custom_call.1} parent=1 // loop_header
      %s22 = sphi 0, %s26
      %p23 = scmp.ge.s32.totalorder %s22, 4
      %s32 = sphi 0, %s34
      %s35 = sphi 0, %s32
      %s36 = sphi 0, %s35
      %s52 = sphi 0, %s36
      %s56 = sphi 0, %s56
      %s58 = sphi 0, %s56
      %s59 = sphi 0, %s58
      %s73 = sphi 0, %s59
      %s77 = sphi 0, %s77
      %s79 = sphi 0, %s77
      %s80 = sphi 0, %s79
      %s94 = sphi 0, %s80
      %s100 = sphi 0, %s102
      %s103 = sphi 0, %s100
      %s104 = sphi 0, %s103
      %s120 = sphi 0, %s104
    $region4: #{tpu_custom_call.1} parent=1 // loop_header_branch
      %25 = sbr.rel (%p23) target = $region8
    $region5: #{tpu_custom_call.1} parent=1 // loop_body
      %s27 = ssub.s32 %s22, 1
      %s28 = ssub.s32 %s22, 2
      %s29 = sadd.s32 %s22, 1
      %s30 = ssub.s32 %s22, %s29
      %p31 = scmp.eq.s32.totalorder %s30, 0
      %s33 = sadd.s32 %s32, 1
      %s34 = scalar_select %p31, %s32, %s33
      %p37 = pneg %p31
      %p38 = scmp.eq.s32.totalorder %s22, 1
      %p39 = por %p37, %p38
      %p40 = scmp.ne.s32.totalorder %s32, %s35
      %p41 = scmp.eq.s32.totalorder %s22, 0
      %p42 = por %p40, %p41
      %p43 = scmp.ne.s32.totalorder %s32, %s35
      %p44 = scmp.eq.s32.totalorder %s27, 1
      %p45 = por %p43, %p44
      %p46 = scmp.ne.s32.totalorder %s35, %s36
      %p47 = scmp.eq.s32.totalorder %s27, 0
      %p48 = por %p46, %p47
      %p49 = scmp.ne.s32.totalorder %s35, %s36
      %p50 = scmp.eq.s32.totalorder %s28, 1
      %p51 = por %p49, %p50
      %p53 = scmp.ne.s32.totalorder %s36, %s52
      %p54 = scmp.eq.s32.totalorder %s28, 0
      %p55 = por %p53, %p54
      %s57 = sadd.s32 %s56, 1
      %p60 = scmp.eq.s32.totalorder %s22, 1
      %p61 = scmp.ne.s32.totalorder %s56, %s58
      %p62 = scmp.eq.s32.totalorder %s22, 0
      %p63 = por %p61, %p62
      %p64 = scmp.ne.s32.totalorder %s56, %s58
      %p65 = scmp.eq.s32.totalorder %s27, 1
      %p66 = por %p64, %p65
      %p67 = scmp.ne.s32.totalorder %s58, %s59
      %p68 = scmp.eq.s32.totalorder %s27, 0
      %p69 = por %p67, %p68
      %p70 = scmp.ne.s32.totalorder %s58, %s59
      %p71 = scmp.eq.s32.totalorder %s28, 1
      %p72 = por %p70, %p71
      %p74 = scmp.ne.s32.totalorder %s59, %s73
      %p75 = scmp.eq.s32.totalorder %s28, 0
      %p76 = por %p74, %p75
      %s78 = sadd.s32 %s77, 1
      %p81 = scmp.eq.s32.totalorder %s22, 1
      %p82 = scmp.ne.s32.totalorder %s77, %s79
      %p83 = scmp.eq.s32.totalorder %s22, 0
      %p84 = por %p82, %p83
      %p85 = scmp.ne.s32.totalorder %s77, %s79
      %p86 = scmp.eq.s32.totalorder %s27, 1
      %p87 = por %p85, %p86
      %p88 = scmp.ne.s32.totalorder %s79, %s80
      %p89 = scmp.eq.s32.totalorder %s27, 0
      %p90 = por %p88, %p89
      %p91 = scmp.ne.s32.totalorder %s79, %s80
      %p92 = scmp.eq.s32.totalorder %s28, 1
      %p93 = por %p91, %p92
      %p95 = scmp.ne.s32.totalorder %s80, %s94
      %p96 = scmp.eq.s32.totalorder %s28, 0
      %p97 = por %p95, %p96
      %s98 = ssub.s32 %s22, %s29
      %p99 = scmp.eq.s32.totalorder %s98, 0
      %s101 = sadd.s32 %s100, 1
      %s102 = scalar_select %p99, %s100, %s101
      %p105 = pneg %p99
      %p106 = scmp.eq.s32.totalorder %s22, 1
      %p107 = por %p105, %p106
      %p108 = scmp.ne.s32.totalorder %s100, %s103
      %p109 = scmp.eq.s32.totalorder %s22, 0
      %p110 = por %p108, %p109
      %p111 = scmp.ne.s32.totalorder %s100, %s103
      %p112 = scmp.eq.s32.totalorder %s27, 1
      %p113 = por %p111, %p112
      %p114 = scmp.ne.s32.totalorder %s103, %s104
      %p115 = scmp.eq.s32.totalorder %s27, 0
      %p116 = por %p114, %p115
      %p117 = scmp.ne.s32.totalorder %s103, %s104
      %p118 = scmp.eq.s32.totalorder %s28, 1
      %p119 = por %p117, %p118
      %p121 = scmp.ne.s32.totalorder %s104, %s120
      %p122 = scmp.eq.s32.totalorder %s28, 0
      %p123 = por %p121, %p122
      %p124 = scmp.le.s32.totalorder 1, %s22
      %p125 = scmp.lt.s32.totalorder %s22, 3
      %p126 = pnand %p124, %p125
      %p127 = pneg %p126
      // Predicated region
      $region9: #{tpu_custom_call.1} parent=5 // pred_check
        _
      $region10: #{tpu_custom_call.1} parent=5 // pred_check_branch
        %129 = sbr.rel (%p126) target = $region12
      $region11: #{tpu_custom_call.1} parent=5 // pred_region
        %s130 = ssub.s32 %s22, 1
        // Predicated region
        $region13: #{tpu_custom_call.1} parent=11 // pred_check
          %p131 = pneg %p69
        $region14: #{tpu_custom_call.1} parent=11 // pred_check_branch
          %133 = sbr.rel (%p131) target = $region16
        $region15: #{tpu_custom_call.1} parent=11 // pred_region
          _
        $region16: #{tpu_custom_call.1} parent=11 // pred_fallthru
          _
        // Predicated region
        $region17: #{tpu_custom_call.1} parent=11 // pred_check
          %p134 = pneg %p90
        $region18: #{tpu_custom_call.1} parent=11 // pred_check_branch
          %136 = sbr.rel (%p134) target = $region20
        $region19: #{tpu_custom_call.1} parent=11 // pred_region
          _
        $region20: #{tpu_custom_call.1} parent=11 // pred_fallthru
          _
      $region12: #{tpu_custom_call.1} parent=5 // pred_fallthru
        _
      %p137 = scmp.lt.s32.totalorder %s22, 2
      // Predicated region
      $region21: #{tpu_custom_call.1} parent=5 // pred_check
        %p138 = pneg %p137
      $region22: #{tpu_custom_call.1} parent=5 // pred_check_branch
        %140 = sbr.rel (%p138) target = $region24
      $region23: #{tpu_custom_call.1} parent=5 // pred_region
        // Predicated region
        $region25: #{tpu_custom_call.1} parent=23 // pred_check
          %p141 = pneg %p42
        $region26: #{tpu_custom_call.1} parent=23 // pred_check_branch
          %143 = sbr.rel (%p141) target = $region28
        $region27: #{tpu_custom_call.1} parent=23 // pred_region
          %p144 = scmp.lt.s32.totalorder %s22, 1
          %s145 = scalar_select %p144, %s22, 1
          %s146 = smul.addr %s145, 8
          %s147 = scalar_lea.vmem %s2, %s146
        $region28: #{tpu_custom_call.1} parent=23 // pred_fallthru
          _
      $region24: #{tpu_custom_call.1} parent=5 // pred_fallthru
        _
      %p148 = scmp.le.s32.totalorder 1, %s22
      %p149 = scmp.lt.s32.totalorder %s22, 3
      %p150 = pnand %p148, %p149
      %p151 = pneg %p150
      // Predicated region
      $region29: #{tpu_custom_call.1} parent=5 // pred_check
        _
      $region30: #{tpu_custom_call.1} parent=5 // pred_check_branch
        %153 = sbr.rel (%p150) target = $region32
      $region31: #{tpu_custom_call.1} parent=5 // pred_region
        %s154 = ssub.s32 %s22, 1
        %p155 = scmp.lt.s32.totalorder %s27, 1
        %s156 = scalar_select %p155, %s27, 1
        %s157 = smul.addr %s156, 8
        %s158 = scalar_lea.vmem %s2, %s157
        %p159 = pneg %p48
        %p160 = pneg %p45
        %p161 = pneg %p69
        %p162 = pneg %p66
        %p163 = pneg %p90
        %p164 = pneg %p87
        %p165 = pneg %p116
        %p166 = pneg %p113
        %s167 = sand.u32 %s103, 1
        %s168 = scalar_lea.sflag [#allocation8], %s167
        %s169 = sand.u32 %s103, 1
        %s170 = smul.addr %s169, 8
        %s171 = scalar_lea.vmem [#allocation7], %s170
        %p172 = scmp.lt.s32.totalorder %s27, 1
        %s173 = scalar_select %p172, %s27, 1
        %s174 = smul.addr %s173, 8
        %s175 = scalar_lea.vmem %s2, %s174
        %p176 = scmp.lt.s32.totalorder %s27, 0
        %s177 = ssub.s32 0, %s27
        %s178 = scalar_select %p176, %s177, %s27
        %s179 = sand.u32 %s178, 1
        %s180 = ssub.s32 0, %s179
        %s181 = scalar_select %p176, %s180, %s179
        %p182 = scmp.ne.s32.totalorder %s181, 0
        %p183 = scmp.lt.s32.totalorder %s181, 0
        %p184 = pnand %p183, %p182
        %p185 = pneg %p184
        %s186 = sadd.s32 %s181, 2
        %s187 = scalar_select %p185, %s186, %s181
        %s188 = smul.u32 %s187, 8
        %p189 = scmp.eq.s32.totalorder %s27, 0
        // Predicated region
        $region33: #{tpu_custom_call.1} parent=31 // pred_check
          %p190 = pneg %p189
        $region34: #{tpu_custom_call.1} parent=31 // pred_check_branch
          %192 = sbr.rel (%p190) target = $region36
        $region35: #{tpu_custom_call.1} parent=31 // pred_region
          %s193 = smul.u32 %s27, 8
          %s194 = sld [smem:[#allocation5 + %s193]]
          %s195 = smul.addr %s194, 16
          %s196 = scalar_lea.hbm %s3, %s195
          %s197 = scalar_lea.vmem [#allocation2], %s188
          %s198 = scalar_lea.sflag [#allocation3], %s187
          // Predicated region
          $region37: #{tpu_custom_call.1} parent=35 // pred_check
            _
          $region38: #{tpu_custom_call.1} parent=35 // pred_check_branch
            %200 = sbr.rel target = $region40
          $region39: #{tpu_custom_call.1} parent=35 // pred_region
            %201 = sst [smem:[#allocation11]] [#allocation10]
            %202 = sst [smem:[#allocation12]] [#allocation9]
          $region40: #{tpu_custom_call.1} parent=35 // pred_fallthru
            _
          %204 = shalt.err (0)
          %s206 = sshll.u32 %s197, 4
          %s207 = int_to_ptr.vmem [resolvable:$true] %s206
          %209 = dma.hbm_to_vmem [thread:$0]  %s196, 16, %s207, %s198
          %s210 = sadd.s32 %s193, 1
          %s211 = sld [smem:[#allocation5 + %s210]]
          %s212 = sadd.s32 %s188, 1
          %s213 = smul.addr %s211, 16
          %s214 = scalar_lea.hbm %s3, %s213
          %s215 = scalar_lea.vmem [#allocation2], %s212
          // Predicated region
          $region41: #{tpu_custom_call.1} parent=35 // pred_check
            _
          $region42: #{tpu_custom_call.1} parent=35 // pred_check_branch
            %217 = sbr.rel target = $region44
          $region43: #{tpu_custom_call.1} parent=35 // pred_region
            %218 = sst [smem:[#allocation11]] [#allocation14]
            %219 = sst [smem:[#allocation12]] [#allocation13]
          $region44: #{tpu_custom_call.1} parent=35 // pred_fallthru
            _
          %221 = shalt.err (0)
          %s223 = sshll.u32 %s215, 4
          %s224 = int_to_ptr.vmem [resolvable:$true] %s223
          %226 = dma.hbm_to_vmem [thread:$0]  %s214, 16, %s224, %s198
          %s227 = sadd.s32 %s193, 2
          %s228 = sld [smem:[#allocation5 + %s227]]
          %s229 = sadd.s32 %s188, 2
          %s230 = smul.addr %s228, 16
          %s231 = scalar_lea.hbm %s3, %s230
          %s232 = scalar_lea.vmem [#allocation2], %s229
          // Predicated region
          $region45: #{tpu_custom_call.1} parent=35 // pred_check
            _
          $region46: #{tpu_custom_call.1} parent=35 // pred_check_branch
            %234 = sbr.rel target = $region48
          $region47: #{tpu_custom_call.1} parent=35 // pred_region
            %235 = sst [smem:[#allocation11]] [#allocation16]
            %236 = sst [smem:[#allocation12]] [#allocation15]
          $region48: #{tpu_custom_call.1} parent=35 // pred_fallthru
            _
          %238 = shalt.err (0)
          %s240 = sshll.u32 %s232, 4
          %s241 = int_to_ptr.vmem [resolvable:$true] %s240
          %243 = dma.hbm_to_vmem [thread:$0]  %s231, 16, %s241, %s198
          %s244 = sadd.s32 %s193, 3
          %s245 = sld [smem:[#allocation5 + %s244]]
          %s246 = sadd.s32 %s188, 3
          %s247 = smul.addr %s245, 16
          %s248 = scalar_lea.hbm %s3, %s247
          %s249 = scalar_lea.vmem [#allocation2], %s246
          // Predicated region
          $region49: #{tpu_custom_call.1} parent=35 // pred_check
            _
          $region50: #{tpu_custom_call.1} parent=35 // pred_check_branch
            %251 = sbr.rel target = $region52
          $region51: #{tpu_custom_call.1} parent=35 // pred_region
            %252 = sst [smem:[#allocation11]] [#allocation18]
            %253 = sst [smem:[#allocation12]] [#allocation17]
          $region52: #{tpu_custom_call.1} parent=35 // pred_fallthru
            _
          %255 = shalt.err (0)
          %s257 = sshll.u32 %s249, 4
          %s258 = int_to_ptr.vmem [resolvable:$true] %s257
          %260 = dma.hbm_to_vmem [thread:$0]  %s248, 16, %s258, %s198
          %s261 = sadd.s32 %s193, 4
          %s262 = sld [smem:[#allocation5 + %s261]]
          %s263 = sadd.s32 %s188, 4
          %s264 = smul.addr %s262, 16
          %s265 = scalar_lea.hbm %s3, %s264
          %s266 = scalar_lea.vmem [#allocation2], %s263
          // Predicated region
          $region53: #{tpu_custom_call.1} parent=35 // pred_check
            _
          $region54: #{tpu_custom_call.1} parent=35 // pred_check_branch
            %268 = sbr.rel target = $region56
          $region55: #{tpu_custom_call.1} parent=35 // pred_region
            %269 = sst [smem:[#allocation11]] [#allocation20]
            %270 = sst [smem:[#allocation12]] [#allocation19]
          $region56: #{tpu_custom_call.1} parent=35 // pred_fallthru
            _
          %272 = shalt.err (0)
          %s274 = sshll.u32 %s266, 4
          %s275 = int_to_ptr.vmem [resolvable:$true] %s274
          %277 = dma.hbm_to_vmem [thread:$0]  %s265, 16, %s275, %s198
          %s278 = sadd.s32 %s193, 5
          %s279 = sld [smem:[#allocation5 + %s278]]
          %s280 = sadd.s32 %s188, 5
          %s281 = smul.addr %s279, 16
          %s282 = scalar_lea.hbm %s3, %s281
          %s283 = scalar_lea.vmem [#allocation2], %s280
          // Predicated region
          $region57: #{tpu_custom_call.1} parent=35 // pred_check
            _
          $region58: #{tpu_custom_call.1} parent=35 // pred_check_branch
            %285 = sbr.rel target = $region60
          $region59: #{tpu_custom_call.1} parent=35 // pred_region
            %286 = sst [smem:[#allocation11]] [#allocation22]
            %287 = sst [smem:[#allocation12]] [#allocation21]
          $region60: #{tpu_custom_call.1} parent=35 // pred_fallthru
            _
          %289 = shalt.err (0)
          %s291 = sshll.u32 %s283, 4
          %s292 = int_to_ptr.vmem [resolvable:$true] %s291
          %294 = dma.hbm_to_vmem [thread:$0]  %s282, 16, %s292, %s198
          %s295 = sadd.s32 %s193, 6
          %s296 = sld [smem:[#allocation5 + %s295]]
          %s297 = sadd.s32 %s188, 6
          %s298 = smul.addr %s296, 16
          %s299 = scalar_lea.hbm %s3, %s298
          %s300 = scalar_lea.vmem [#allocation2], %s297
          // Predicated region
          $region61: #{tpu_custom_call.1} parent=35 // pred_check
            _
          $region62: #{tpu_custom_call.1} parent=35 // pred_check_branch
            %302 = sbr.rel target = $region64
          $region63: #{tpu_custom_call.1} parent=35 // pred_region
            %303 = sst [smem:[#allocation11]] [#allocation24]
            %304 = sst [smem:[#allocation12]] [#allocation23]
          $region64: #{tpu_custom_call.1} parent=35 // pred_fallthru
            _
          %306 = shalt.err (0)
          %s308 = sshll.u32 %s300, 4
          %s309 = int_to_ptr.vmem [resolvable:$true] %s308
          %311 = dma.hbm_to_vmem [thread:$0]  %s299, 16, %s309, %s198
          %s312 = sadd.s32 %s193, 7
          %s313 = sld [smem:[#allocation5 + %s312]]
          %s314 = sadd.s32 %s188, 7
          %s315 = smul.addr %s313, 16
          %s316 = scalar_lea.hbm %s3, %s315
          %s317 = scalar_lea.vmem [#allocation2], %s314
          // Predicated region
          $region65: #{tpu_custom_call.1} parent=35 // pred_check
            _
          $region66: #{tpu_custom_call.1} parent=35 // pred_check_branch
            %319 = sbr.rel target = $region68
          $region67: #{tpu_custom_call.1} parent=35 // pred_region
            %320 = sst [smem:[#allocation11]] [#allocation26]
            %321 = sst [smem:[#allocation12]] [#allocation25]
          $region68: #{tpu_custom_call.1} parent=35 // pred_fallthru
            _
          %323 = shalt.err (0)
          %s325 = sshll.u32 %s317, 4
          %s326 = int_to_ptr.vmem [resolvable:$true] %s325
          %328 = dma.hbm_to_vmem [thread:$0]  %s316, 16, %s326, %s198
        $region36: #{tpu_custom_call.1} parent=31 // pred_fallthru
          _
        %s329 = sadd.s32 %s27, 1
        %p330 = scmp.lt.s32.totalorder %s329, 2
        // Predicated region
        $region69: #{tpu_custom_call.1} parent=31 // pred_check
          %p331 = pneg %p330
        $region70: #{tpu_custom_call.1} parent=31 // pred_check_branch
          %333 = sbr.rel (%p331) target = $region72
        $region71: #{tpu_custom_call.1} parent=31 // pred_region
          %s334 = ssub.s32 1, %s187
          %s335 = smul.u32 %s329, 8
          %s336 = smul.u32 %s334, 8
          %s337 = sld [smem:[#allocation5 + %s335]]
          %s338 = smul.addr %s337, 16
          %s339 = scalar_lea.hbm %s3, %s338
          %s340 = scalar_lea.vmem [#allocation2], %s336
          %s341 = scalar_lea.sflag [#allocation3], %s334
          // Predicated region
          $region73: #{tpu_custom_call.1} parent=71 // pred_check
            _
          $region74: #{tpu_custom_call.1} parent=71 // pred_check_branch
            %343 = sbr.rel target = $region76
          $region75: #{tpu_custom_call.1} parent=71 // pred_region
            %344 = sst [smem:[#allocation11]] [#allocation28]
            %345 = sst [smem:[#allocation12]] [#allocation27]
          $region76: #{tpu_custom_call.1} parent=71 // pred_fallthru
            _
          %347 = shalt.err (0)
          %s349 = sshll.u32 %s340, 4
          %s350 = int_to_ptr.vmem [resolvable:$true] %s349
          %352 = dma.hbm_to_vmem [thread:$0]  %s339, 16, %s350, %s341
          %s353 = sadd.s32 %s335, 1
          %s354 = sld [smem:[#allocation5 + %s353]]
          %s355 = sadd.s32 %s336, 1
          %s356 = smul.addr %s354, 16
          %s357 = scalar_lea.hbm %s3, %s356
          %s358 = scalar_lea.vmem [#allocation2], %s355
          // Predicated region
          $region77: #{tpu_custom_call.1} parent=71 // pred_check
            _
          $region78: #{tpu_custom_call.1} parent=71 // pred_check_branch
            %360 = sbr.rel target = $region80
          $region79: #{tpu_custom_call.1} parent=71 // pred_region
            %361 = sst [smem:[#allocation11]] [#allocation30]
            %362 = sst [smem:[#allocation12]] [#allocation29]
          $region80: #{tpu_custom_call.1} parent=71 // pred_fallthru
            _
          %364 = shalt.err (0)
          %s366 = sshll.u32 %s358, 4
          %s367 = int_to_ptr.vmem [resolvable:$true] %s366
          %369 = dma.hbm_to_vmem [thread:$0]  %s357, 16, %s367, %s341
          %s370 = sadd.s32 %s335, 2
          %s371 = sld [smem:[#allocation5 + %s370]]
          %s372 = sadd.s32 %s336, 2
          %s373 = smul.addr %s371, 16
          %s374 = scalar_lea.hbm %s3, %s373
          %s375 = scalar_lea.vmem [#allocation2], %s372
          // Predicated region
          $region81: #{tpu_custom_call.1} parent=71 // pred_check
            _
          $region82: #{tpu_custom_call.1} parent=71 // pred_check_branch
            %377 = sbr.rel target = $region84
          $region83: #{tpu_custom_call.1} parent=71 // pred_region
            %378 = sst [smem:[#allocation11]] [#allocation32]
            %379 = sst [smem:[#allocation12]] [#allocation31]
          $region84: #{tpu_custom_call.1} parent=71 // pred_fallthru
            _
          %381 = shalt.err (0)
          %s383 = sshll.u32 %s375, 4
          %s384 = int_to_ptr.vmem [resolvable:$true] %s383
          %386 = dma.hbm_to_vmem [thread:$0]  %s374, 16, %s384, %s341
          %s387 = sadd.s32 %s335, 3
          %s388 = sld [smem:[#allocation5 + %s387]]
          %s389 = sadd.s32 %s336, 3
          %s390 = smul.addr %s388, 16
          %s391 = scalar_lea.hbm %s3, %s390
          %s392 = scalar_lea.vmem [#allocation2], %s389
          // Predicated region
          $region85: #{tpu_custom_call.1} parent=71 // pred_check
            _
          $region86: #{tpu_custom_call.1} parent=71 // pred_check_branch
            %394 = sbr.rel target = $region88
          $region87: #{tpu_custom_call.1} parent=71 // pred_region
            %395 = sst [smem:[#allocation11]] [#allocation34]
            %396 = sst [smem:[#allocation12]] [#allocation33]
          $region88: #{tpu_custom_call.1} parent=71 // pred_fallthru
            _
          %398 = shalt.err (0)
          %s400 = sshll.u32 %s392, 4
          %s401 = int_to_ptr.vmem [resolvable:$true] %s400
          %403 = dma.hbm_to_vmem [thread:$0]  %s391, 16, %s401, %s341
          %s404 = sadd.s32 %s335, 4
          %s405 = sld [smem:[#allocation5 + %s404]]
          %s406 = sadd.s32 %s336, 4
          %s407 = smul.addr %s405, 16
          %s408 = scalar_lea.hbm %s3, %s407
          %s409 = scalar_lea.vmem [#allocation2], %s406
          // Predicated region
          $region89: #{tpu_custom_call.1} parent=71 // pred_check
            _
          $region90: #{tpu_custom_call.1} parent=71 // pred_check_branch
            %411 = sbr.rel target = $region92
          $region91: #{tpu_custom_call.1} parent=71 // pred_region
            %412 = sst [smem:[#allocation11]] [#allocation36]
            %413 = sst [smem:[#allocation12]] [#allocation35]
          $region92: #{tpu_custom_call.1} parent=71 // pred_fallthru
            _
          %415 = shalt.err (0)
          %s417 = sshll.u32 %s409, 4
          %s418 = int_to_ptr.vmem [resolvable:$true] %s417
          %420 = dma.hbm_to_vmem [thread:$0]  %s408, 16, %s418, %s341
          %s421 = sadd.s32 %s335, 5
          %s422 = sld [smem:[#allocation5 + %s421]]
          %s423 = sadd.s32 %s336, 5
          %s424 = smul.addr %s422, 16
          %s425 = scalar_lea.hbm %s3, %s424
          %s426 = scalar_lea.vmem [#allocation2], %s423
          // Predicated region
          $region93: #{tpu_custom_call.1} parent=71 // pred_check
            _
          $region94: #{tpu_custom_call.1} parent=71 // pred_check_branch
            %428 = sbr.rel target = $region96
          $region95: #{tpu_custom_call.1} parent=71 // pred_region
            %429 = sst [smem:[#allocation11]] [#allocation38]
            %430 = sst [smem:[#allocation12]] [#allocation37]
          $region96: #{tpu_custom_call.1} parent=71 // pred_fallthru
            _
          %432 = shalt.err (0)
          %s434 = sshll.u32 %s426, 4
          %s435 = int_to_ptr.vmem [resolvable:$true] %s434
          %437 = dma.hbm_to_vmem [thread:$0]  %s425, 16, %s435, %s341
          %s438 = sadd.s32 %s335, 6
          %s439 = sld [smem:[#allocation5 + %s438]]
          %s440 = sadd.s32 %s336, 6
          %s441 = smul.addr %s439, 16
          %s442 = scalar_lea.hbm %s3, %s441
          %s443 = scalar_lea.vmem [#allocation2], %s440
          // Predicated region
          $region97: #{tpu_custom_call.1} parent=71 // pred_check
            _
          $region98: #{tpu_custom_call.1} parent=71 // pred_check_branch
            %445 = sbr.rel target = $region100
          $region99: #{tpu_custom_call.1} parent=71 // pred_region
            %446 = sst [smem:[#allocation11]] [#allocation40]
            %447 = sst [smem:[#allocation12]] [#allocation39]
          $region100: #{tpu_custom_call.1} parent=71 // pred_fallthru
            _
          %449 = shalt.err (0)
          %s451 = sshll.u32 %s443, 4
          %s452 = int_to_ptr.vmem [resolvable:$true] %s451
          %454 = dma.hbm_to_vmem [thread:$0]  %s442, 16, %s452, %s341
          %s455 = sadd.s32 %s335, 7
          %s456 = sld [smem:[#allocation5 + %s455]]
          %s457 = sadd.s32 %s336, 7
          %s458 = smul.addr %s456, 16
          %s459 = scalar_lea.hbm %s3, %s458
          %s460 = scalar_lea.vmem [#allocation2], %s457
          // Predicated region
          $region101: #{tpu_custom_call.1} parent=71 // pred_check
            _
          $region102: #{tpu_custom_call.1} parent=71 // pred_check_branch
            %462 = sbr.rel target = $region104
          $region103: #{tpu_custom_call.1} parent=71 // pred_region
            %463 = sst [smem:[#allocation11]] [#allocation42]
            %464 = sst [smem:[#allocation12]] [#allocation41]
          $region104: #{tpu_custom_call.1} parent=71 // pred_fallthru
            _
          %466 = shalt.err (0)
          %s468 = sshll.u32 %s460, 4
          %s469 = int_to_ptr.vmem [resolvable:$true] %s468
          %471 = dma.hbm_to_vmem [thread:$0]  %s459, 16, %s469, %s341
        $region72: #{tpu_custom_call.1} parent=31 // pred_fallthru
          _
        %v472 = vld [vmem:[%s4] sm:$0xff]
        %v473 = vld [vmem:[%s5] sm:$0x7]
        %v474 = vld [vmem:[%s175] sm:$0xff]
        %vm475 = vcmp.eq.s32.totalorder %v474, 0
        %vm476 = vcmp.eq.s32.totalorder %v474, 1
        %v477 = vsel %vm476, 1, 0
        %478 = vset.pattern.permute.xlu0 0
        %479 = vperm.xlu0 %478, %v477
        %v480 = vpop.permute.xlu0 %479
        %vm481 = vcmp.eq.s32.totalorder %v480, 1
        %v482 = vlaneseq
        %v483 = vshrl.u32 %v482, 7
        %v484 = vsub.s32 1, %v483
        %v485 = vrot.slane %v473, %v484
        %v486 = vlaneseq
        %v487 = vshrl.u32 %v486, 7
        %v488 = vsub.s32 2, %v487
        %v489 = vrot.slane %v473, %v488
        %v490 = vsel %vm481, %v485, %v489
        %v491 = vsel %vm475, 1, 0
        %492 = vset.pattern.permute.xlu0 0
        %493 = vperm.xlu0 %492, %v491
        %v494 = vpop.permute.xlu0 %493
        %vm495 = vcmp.eq.s32.totalorder %v494, 1
        %v496 = vlaneseq
        %v497 = vshrl.u32 %v496, 7
        %v498 = vsub.s32 0, %v497
        %v499 = vrot.slane %v473, %v498
        %v500 = vsel %vm495, %v499, %v490
        %v501 = vadd.f32 %v472, %v500
        %s502 = scalar_lea.vmem [#allocation2], %s188
        %s503 = scalar_lea.sflag [#allocation3], %s187
        %s504 = smul.u32 8, 1
        %s505 = sshll.u32 %s504, 4
        %506 = dma.done %s503, %s505
        %v507 = vld [vmem:[%s502] sm:$0xff]
        %v508 = vadd.f32 %v507, %v501
        %509 = vst [vmem:[%s171] sm:$0xff] %v508
        %s510 = sand.u32 %s103, 1
        %s511 = scalar_lea.sflag [#allocation8], %s510
        %s512 = sand.u32 %s103, 1
        %s513 = smul.addr %s512, 8
        %s514 = scalar_lea.vmem [#allocation7], %s513
        // Predicated region
        $region105: #{tpu_custom_call.1} parent=31 // pred_check
          %p515 = pneg %p113
        $region106: #{tpu_custom_call.1} parent=31 // pred_check_branch
          %517 = sbr.rel (%p515) target = $region108
        $region107: #{tpu_custom_call.1} parent=31 // pred_region
          %s519 = ssub.s32 128, 128
          %520 = vsyncadd %s511, %s519
          %s521 = smul.addr %s27, 128
          %s522 = scalar_lea.hbm %s6, %s521
          %s524 = sshll.u32 %s514, 4
          %s525 = int_to_ptr.vmem [resolvable:$true] %s524
          %527 = dma.vmem_to_hbm [thread:$0]  %s525, 128, %s522, %s511
        $region108: #{tpu_custom_call.1} parent=31 // pred_fallthru
          _
      $region32: #{tpu_custom_call.1} parent=5 // pred_fallthru
        _
      %p528 = scmp.le.s32.totalorder 2, %s22
      // Predicated region
      $region109: #{tpu_custom_call.1} parent=5 // pred_check
        %p529 = pneg %p528
      $region110: #{tpu_custom_call.1} parent=5 // pred_check_branch
        %531 = sbr.rel (%p529) target = $region112
      $region111: #{tpu_custom_call.1} parent=5 // pred_region
        %s532 = ssub.s32 %s22, 2
        // Predicated region
        $region113: #{tpu_custom_call.1} parent=111 // pred_check
          %p533 = pneg %p119
        $region114: #{tpu_custom_call.1} parent=111 // pred_check_branch
          %535 = sbr.rel (%p533) target = $region116
        $region115: #{tpu_custom_call.1} parent=111 // pred_region
          %s536 = sand.u32 %s104, 1
          %s537 = scalar_lea.sflag [#allocation8], %s536
          %s538 = sand.u32 %s104, 1
          %s539 = smul.addr %s538, 8
          %s540 = scalar_lea.vmem [#allocation7], %s539
          %541 = dma.done %s537, 128
        $region116: #{tpu_custom_call.1} parent=111 // pred_fallthru
          _
      $region112: #{tpu_custom_call.1} parent=5 // pred_fallthru
        _
    $region6: #{tpu_custom_call.1} parent=1 // loop_footer
      %s26 = sadd.s32 1, %s22
    $region7: #{tpu_custom_call.1} parent=1 // loop_footer_branch
      %21 = sbr.rel target = $region3
    $region8: #{tpu_custom_call.1} parent=1 // loop_exit
      _
    %542 = vsyncpa [#allocation8], 1
    %s543 = scalar_lea.sflag [#allocation8], 1
    %544 = vsyncpa %s543, 1
  %545 = vsyncmov [#allocation3]
  %s546 = vpop.sfrf %545
  %p547 = scmp.eq.s32.totalorder %s546, 0
  %p548 = pneg %p547
  %550 = shalt.err (%p548)
  %s551 = scalar_lea.sflag [#allocation3], 1
  %552 = vsyncmov %s551
  %s553 = vpop.sfrf %552
  %p554 = scmp.eq.s32.totalorder %s553, 0
  %p555 = pneg %p554
  %557 = shalt.err (%p555)

</llo_original>
